<compile_context>
chip_gen: v5e
topology: v5e:2x2
jax: 0.10.0
libtpu: 0.0.40
codegen_flags: <defaults>
</compile_context>

<pallas_src>
import jax
import jax.numpy as jnp
from jax import lax
from jax.experimental import pallas as pl
from jax.experimental.pallas import tpu as pltpu

LANE = 128
SUBLANE = 8
MAX_TILE_B = 2048


def _round_up(x, m):
    return (x + m - 1) // m * m


def _cdiv(a, b):
    return -(-a // b)


# ----------------------------------------------------------------------------
# Kernel: one batch tile per grid step. Weights resident (constant block index
# across the parallel batch axis). Output is the transposed fused head slab.
# ----------------------------------------------------------------------------
def actor_critic_kernel(x_ref,           # [tile_b, K]        bf16
                        w1_ref, b1_ref,  # [K, fc1] bf16, [1, fc1] f32
                        w2_ref, b2_ref,  # [fc1, fc2] bf16, [1, fc2] f32
                        wh_ref, bh_ref,  # [head_pad, fc2] bf16, [head_pad, 1] f32
                        out_ref):        # [head_pad, tile_b] f32  (pi | v | zeros, transposed)
    # fc1 + relu (K is the true obs dim; accumulate f32, bias/relu in f32)
    h1 = jnp.dot(x_ref[...], w1_ref[...], preferred_element_type=jnp.float32)
    h1 = jnp.maximum(h1 + b1_ref[...], 0.0)
    # fc2 + relu
    h2 = jnp.dot(h1.astype(jnp.bfloat16), w2_ref[...],
                 preferred_element_type=jnp.float32)
    h2 = jnp.maximum(h2 + b2_ref[...], 0.0)
    # Fused pi|v head, produced already transposed: wh_t [H, fc2] . h2^T [fc2, tile_b]
    # (NT dot_general -> [H, tile_b]), so the store is compact and lane-dense.
    out_t = lax.dot_general(
        wh_ref[...], h2.astype(jnp.bfloat16),
        dimension_numbers=(((1,), (1,)), ((), ())),
        preferred_element_type=jnp.float32)
    out_ref[...] = (out_t + bh_ref[...]).astype(out_ref.dtype)


# ----------------------------------------------------------------------------
# Wrapper
# ----------------------------------------------------------------------------
def actor_critic_forward(x, packed, *, n_actions, tile_b=None):
    """x: [B, input_dims] -> (pi [B, n_actions], v [B, 1])."""
    B, K = x.shape
    w1 = packed["w1"]                 # [K, fc1] bf16
    assert w1.shape[0] == K, "packed w1 must match obs dim"
    fc1 = w1.shape[1]
    fc2 = packed["w2"].shape[1]
    head_pad = packed["w_head_t"].shape[0]

    # ---- batch tiling ----
    B8 = _round_up(B, SUBLANE)
    if tile_b is None:
        if B8 < 2 * LANE:
            # Too small to split at 128-lane output granularity: single tile.
            tile_b = B8
        else:
            # >=2 grid steps (keeps both v7x TensorCores busy), capped at 2048.
            tile_b = min(MAX_TILE_B, _round_up(_cdiv(B8, 2), LANE))
    else:
        tile_b = _round_up(tile_b, SUBLANE)
        if tile_b < B8:
            # Multi-step grid: transposed output block needs a 128-multiple lane dim.
            tile_b = _round_up(tile_b, LANE)
    B_pad = _round_up(max(B, 1), tile_b)
    grid_b = B_pad // tile_b

    # ---- input prep (cheap; no 16x lane pad, pad batch rows only if needed) ----
    x_bf = x.astype(jnp.bfloat16)
    if B_pad > B:
        x_bf = jnp.pad(x_bf, ((0, B_pad - B), (0, 0)))

    flops = 2 * B_pad * (K * fc1 + fc1 * fc2 + fc2 * head_pad)
    bytes_accessed = (
        2 * (B_pad * K + K * fc1 + fc1 * fc2 + head_pad * fc2)   # bf16 streams
        + 4 * (fc1 + fc2 + head_pad)                             # f32 biases
        + 4 * head_pad * B_pad)                                  # f32 output slab

    pinned = lambda shape: pl.BlockSpec(shape, lambda i: (0, 0))

    out_t = pl.pallas_call(
        actor_critic_kernel,
        out_shape=jax.ShapeDtypeStruct((head_pad, B_pad), jnp.float32),
        grid_spec=pltpu.PrefetchScalarGridSpec(
            num_scalar_prefetch=0,
            grid=(grid_b,),
            in_specs=[
                pl.BlockSpec((tile_b, K), lambda i: (i, 0)),   # activations stream
                pinned((K, fc1)), pinned((1, fc1)),            # weights resident
                pinned((fc1, fc2)), pinned((1, fc2)),
                pinned((head_pad, fc2)), pinned((head_pad, 1)),
            ],
            out_specs=pl.BlockSpec((head_pad, tile_b), lambda i: (0, i)),
        ),
        compiler_params=pltpu.CompilerParams(
            dimension_semantics=("parallel",),
            vmem_limit_bytes=32 * 1024 * 1024),
        cost_estimate=pl.CostEstimate(flops=flops, transcendentals=0,
                                      bytes_accessed=bytes_accessed),
    )(x_bf,
      packed["w1"], packed["b1"],
      packed["w2"], packed["b2"],
      packed["w_head_t"], packed["b_head_t"])

    # Slice pi / v off the transposed fused slab (tiny; could be deferred to the
    # consumer in a rollout loop to save a couple of XLA dispatches).
    pi = out_t[:n_actions, :B].T
    v = out_t[n_actions:n_actions + 1, :B].T
    return pi, v


# ----------------------------------------------------------------------------
# Parameter init (torch.nn.Linear default: U(-1/sqrt(fan_in), +1/sqrt(fan_in)),
# weights stored transposed as [in, out]) + packing into kernel-friendly layout.
# ----------------------------------------------------------------------------
def init_params(key, input_dims, fc1_dims, fc2_dims, n_actions):
    def linear(k, fan_in, fan_out):
        kw, kb = jax.random.split(k)
        bound = 1.0 / jnp.sqrt(float(fan_in))
        w = jax.random.uniform(kw, (fan_in, fan_out), jnp.float32, -bound, bound)
        b = jax.random.uniform(kb, (1, fan_out), jnp.float32, -bound, bound)
        return w, b

    k1, k2, k3, k4 = jax.random.split(key, 4)
    w1, b1 = linear(k1, input_dims, fc1_dims)
    w2, b2 = linear(k2, fc1_dims, fc2_dims)
    wpi, bpi = linear(k3, fc2_dims, n_actions)
    wv, bv = linear(k4, fc2_dims, 1)
    return dict(w1=w1, b1=b1, w2=w2, b2=b2, wpi=wpi, bpi=bpi, wv=wv, bv=bv)


def pack_params(raw):
    """bf16 weights (f32 biases); pi/v heads fused + transposed to [head_pad, fc2]."""
    fc2_dims = raw["w2"].shape[1]
    n_actions = raw["wpi"].shape[1]
    head_pad = max(SUBLANE, _round_up(n_actions + 1, SUBLANE))

    w_head_t = jnp.zeros((head_pad, fc2_dims), jnp.float32)
    w_head_t = w_head_t.at[:n_actions, :].set(raw["wpi"].T)
    w_head_t = w_head_t.at[n_actions, :].set(raw["wv"][:, 0])
    b_head_t = jnp.zeros((head_pad, 1), jnp.float32)
    b_head_t = b_head_t.at[:n_actions, 0].set(raw["bpi"][0])
    b_head_t = b_head_t.at[n_actions, 0].set(raw["bv"][0, 0])

    bf = jnp.bfloat16
    return dict(w1=raw["w1"].astype(bf), b1=raw["b1"],
                w2=raw["w2"].astype(bf), b2=raw["b2"],
                w_head_t=w_head_t.astype(bf), b_head_t=b_head_t)


if __name__ == "__main__":
    # LunarLander-ish small shapes: obs dim 8, hidden 128/128, 4 discrete actions.
    B, input_dims, fc1_dims, fc2_dims, n_actions = 8, 8, 128, 128, 4

    key = jax.random.PRNGKey(0)
    k_params, k_obs, k_obs2 = jax.random.split(key, 3)
    raw = init_params(k_params, input_dims, fc1_dims, fc2_dims, n_actions)
    packed = pack_params(raw)

    def ref_forward(obs):   # f32 reference of the original module forward
        h1 = jnp.maximum(obs @ raw["w1"] + raw["b1"], 0.0)
        h2 = jnp.maximum(h1 @ raw["w2"] + raw["b2"], 0.0)
        return h2 @ raw["wpi"] + raw["bpi"], h2 @ raw["wv"] + raw["bv"]

    # Rollout-sized batch (single grid step).
    obs = jax.random.normal(k_obs, (B, input_dims), jnp.float32)
    pi, v = actor_critic_forward(obs, packed, n_actions=n_actions)
    jax.block_until_ready((pi, v))
    assert pi.shape == (B, n_actions) and v.shape == (B, 1)
    pi_ref, v_ref = ref_forward(obs)
    # bf16 matmul inputs (f32 accumulation) -> loosened tolerance vs. f32 reference.
    assert jnp.allclose(pi, pi_ref, atol=5e-2, rtol=5e-2)
    assert jnp.allclose(v, v_ref, atol=5e-2, rtol=5e-2)

    # Larger batch: exercises row padding and a >=2-step parallel grid.
    B2 = 300
    obs2 = jax.random.normal(k_obs2, (B2, input_dims), jnp.float32)
    pi2, v2 = actor_critic_forward(obs2, packed, n_actions=n_actions)
    jax.block_until_ready((pi2, v2))
    assert pi2.shape == (B2, n_actions) and v2.shape == (B2, 1)
    pi2_ref, v2_ref = ref_forward(obs2)
    assert jnp.allclose(pi2, pi2_ref, atol=5e-2, rtol=5e-2)
    assert jnp.allclose(v2, v2_ref, atol=5e-2, rtol=5e-2)

    print("KERNEL_OK")
</pallas_src>

<mosaic_0001>
module attributes {stable_mosaic.version = 11 : i64} {
  func.func @actor_critic_kernel(%arg0: i32, %arg1: memref<8x8xbf16, #tpu.memory_space<vmem>>, %arg2: memref<8x128xbf16, #tpu.memory_space<vmem>>, %arg3: memref<1x128xf32, #tpu.memory_space<vmem>>, %arg4: memref<128x128xbf16, #tpu.memory_space<vmem>>, %arg5: memref<1x128xf32, #tpu.memory_space<vmem>>, %arg6: memref<8x128xbf16, #tpu.memory_space<vmem>>, %arg7: memref<8x1xf32, #tpu.memory_space<vmem>>, %arg8: memref<8x8xf32, #tpu.memory_space<vmem>>) attributes {dimension_semantics = [#tpu.dimension_semantics<parallel>], iteration_bounds = array<i64: 1>, scalar_prefetch = 0 : i64, scratch_operands = 0 : i64, tpu.core_type = #tpu.core_type<tc>, window_params = [{transform_indices = @transform_0, window_bounds = array<i64: 8, 8>}, {pipeline_mode = #tpu.pipeline_mode<synchronous>, transform_indices = @transform_1, window_bounds = array<i64: 8, 128>}, {pipeline_mode = #tpu.pipeline_mode<synchronous>, transform_indices = @transform_2, window_bounds = array<i64: 1, 128>}, {pipeline_mode = #tpu.pipeline_mode<synchronous>, transform_indices = @transform_3, window_bounds = array<i64: 128, 128>}, {pipeline_mode = #tpu.pipeline_mode<synchronous>, transform_indices = @transform_4, window_bounds = array<i64: 1, 128>}, {pipeline_mode = #tpu.pipeline_mode<synchronous>, transform_indices = @transform_5, window_bounds = array<i64: 8, 128>}, {pipeline_mode = #tpu.pipeline_mode<synchronous>, transform_indices = @transform_6, window_bounds = array<i64: 8, 1>}, {transform_indices = @transform_7, window_bounds = array<i64: 8, 8>}]} {
    %c0 = arith.constant 0 : index
    %c0_0 = arith.constant 0 : index
    %0 = vector.load %arg1[%c0, %c0_0] : memref<8x8xbf16, #tpu.memory_space<vmem>>, vector<8x8xbf16>
    %c0_1 = arith.constant 0 : index
    %c0_2 = arith.constant 0 : index
    %1 = vector.load %arg2[%c0_1, %c0_2] : memref<8x128xbf16, #tpu.memory_space<vmem>>, vector<8x128xbf16>
    %cst = arith.constant dense<0.000000e+00> : vector<8x128xf32>
    %2 = tpu.matmul %0, %1, %cst {dimension_numbers = #tpu.dot_dimension_numbers<[1], [0], [0], [1], [0, 0, 1, 1], [], []>} : vector<8x8xbf16>, vector<8x128xbf16>, vector<8x128xf32> -> vector<8x128xf32>
    %c0_3 = arith.constant 0 : index
    %c0_4 = arith.constant 0 : index
    %3 = vector.load %arg3[%c0_3, %c0_4] : memref<1x128xf32, #tpu.memory_space<vmem>>, vector<1x128xf32>
    %4 = vector.broadcast %3 : vector<1x128xf32> to vector<8x128xf32>
    %5 = arith.addf %2, %4 : vector<8x128xf32>
    %cst_5 = arith.constant 0.000000e+00 : f32
    %6 = vector.broadcast %cst_5 : f32 to vector<8x128xf32>
    %7 = arith.maximumf %5, %6 : vector<8x128xf32>
    %8 = arith.truncf %7 : vector<8x128xf32> to vector<8x128xbf16>
    %c0_6 = arith.constant 0 : index
    %c0_7 = arith.constant 0 : index
    %9 = vector.load %arg4[%c0_6, %c0_7] : memref<128x128xbf16, #tpu.memory_space<vmem>>, vector<128x128xbf16>
    %cst_8 = arith.constant dense<0.000000e+00> : vector<8x128xf32>
    %10 = tpu.matmul %8, %9, %cst_8 {dimension_numbers = #tpu.dot_dimension_numbers<[1], [0], [0], [1], [0, 0, 1, 1], [], []>} : vector<8x128xbf16>, vector<128x128xbf16>, vector<8x128xf32> -> vector<8x128xf32>
    %c0_9 = arith.constant 0 : index
    %c0_10 = arith.constant 0 : index
    %11 = vector.load %arg5[%c0_9, %c0_10] : memref<1x128xf32, #tpu.memory_space<vmem>>, vector<1x128xf32>
    %12 = vector.broadcast %11 : vector<1x128xf32> to vector<8x128xf32>
    %13 = arith.addf %10, %12 : vector<8x128xf32>
    %cst_11 = arith.constant 0.000000e+00 : f32
    %14 = vector.broadcast %cst_11 : f32 to vector<8x128xf32>
    %15 = arith.maximumf %13, %14 : vector<8x128xf32>
    %c0_12 = arith.constant 0 : index
    %c0_13 = arith.constant 0 : index
    %16 = vector.load %arg6[%c0_12, %c0_13] : memref<8x128xbf16, #tpu.memory_space<vmem>>, vector<8x128xbf16>
    %17 = arith.truncf %15 : vector<8x128xf32> to vector<8x128xbf16>
    %cst_14 = arith.constant dense<0.000000e+00> : vector<8x8xf32>
    %18 = tpu.matmul %16, %17, %cst_14 {dimension_numbers = #tpu.dot_dimension_numbers<[1], [1], [0], [0], [0, 0, 1, 0], [], []>} : vector<8x128xbf16>, vector<8x128xbf16>, vector<8x8xf32> -> vector<8x8xf32>
    %c0_15 = arith.constant 0 : index
    %c0_16 = arith.constant 0 : index
    %19 = vector.load %arg7[%c0_15, %c0_16] : memref<8x1xf32, #tpu.memory_space<vmem>>, vector<8x1xf32>
    %20 = vector.broadcast %19 : vector<8x1xf32> to vector<8x8xf32>
    %21 = arith.addf %18, %20 : vector<8x8xf32>
    %c0_17 = arith.constant 0 : index
    %c0_18 = arith.constant 0 : index
    %22 = vector.load %arg8[%c0_17, %c0_18] : memref<8x8xf32, #tpu.memory_space<vmem>>, vector<8x8xf32>
    tpu.vector_store %arg8[%c0_17, %c0_18], %21 {strides = array<i32>} : memref<8x8xf32, #tpu.memory_space<vmem>>, vector<8x8xf32>,
    return
  }
  func.func @transform_0(%arg0: i32) -> (i32, i32) {
    %c0_i32 = arith.constant 0 : i32
    %c0_i32_0 = arith.constant 0 : i32
    return %arg0, %c0_i32 : i32, i32
  }
  func.func @transform_1(%arg0: i32) -> (i32, i32) {
    %c0_i32 = arith.constant 0 : i32
    %c0_i32_0 = arith.constant 0 : i32
    %c0_i32_1 = arith.constant 0 : i32
    return %c0_i32, %c0_i32_0 : i32, i32
  }
  func.func @transform_2(%arg0: i32) -> (i32, i32) {
    %c0_i32 = arith.constant 0 : i32
    %c0_i32_0 = arith.constant 0 : i32
    %c0_i32_1 = arith.constant 0 : i32
    return %c0_i32, %c0_i32_0 : i32, i32
  }
  func.func @transform_3(%arg0: i32) -> (i32, i32) {
    %c0_i32 = arith.constant 0 : i32
    %c0_i32_0 = arith.constant 0 : i32
    %c0_i32_1 = arith.constant 0 : i32
    return %c0_i32, %c0_i32_0 : i32, i32
  }
  func.func @transform_4(%arg0: i32) -> (i32, i32) {
    %c0_i32 = arith.constant 0 : i32
    %c0_i32_0 = arith.constant 0 : i32
    %c0_i32_1 = arith.constant 0 : i32
    return %c0_i32, %c0_i32_0 : i32, i32
  }
  func.func @transform_5(%arg0: i32) -> (i32, i32) {
    %c0_i32 = arith.constant 0 : i32
    %c0_i32_0 = arith.constant 0 : i32
    %c0_i32_1 = arith.constant 0 : i32
    return %c0_i32, %c0_i32_0 : i32, i32
  }
  func.func @transform_6(%arg0: i32) -> (i32, i32) {
    %c0_i32 = arith.constant 0 : i32
    %c0_i32_0 = arith.constant 0 : i32
    %c0_i32_1 = arith.constant 0 : i32
    return %c0_i32, %c0_i32_0 : i32, i32
  }
  func.func @transform_7(%arg0: i32) -> (i32, i32) {
    %c0_i32 = arith.constant 0 : i32
    %c0_i32_0 = arith.constant 0 : i32
    return %c0_i32, %arg0 : i32, i32
  }
}

</mosaic_0001>

<llo_original>
// kernel: tpu_custom_call.1
$region0: #{tpu_custom_call.1}
  #allocation0 [shape = 'u32[]', space=smem, size = 0x4, offset = 0x4, fixed_abs, tag = 'smem constant byte address 0x4 - core index']
  #allocation1 [shape = 'u32[72,128]{1,0:T(1,128)}', space=vmem, size = 0x9000, scoped, tag = 'internal scratch']
  %s0 = inlined_call_operand.vmem [shape: bf16[8,8], index: 0, kind: input, shape index: {}]
  %s1 = inlined_call_operand.vmem [shape: bf16[8,128], index: 1, kind: input, shape index: {}]
  %s2 = inlined_call_operand.hbm [shape: f32[1,128], index: 2, kind: input, shape index: {}]
  %s3 = inlined_call_operand.hbm [shape: bf16[128,128], index: 3, kind: input, shape index: {}]
  %s4 = inlined_call_operand.hbm [shape: f32[1,128], index: 4, kind: input, shape index: {}]
  %s5 = inlined_call_operand.vmem [shape: bf16[8,128], index: 5, kind: input, shape index: {}]
  %s6 = inlined_call_operand.vmem [shape: f32[8,1], index: 6, kind: input, shape index: {}]
  %s7 = inlined_call_operand.hbm [shape: f32[8,8], index: 7, kind: output, shape index: {}]
  %s8 = sld [smem:[#allocation0]]
  $region50: #{tpu_custom_call.1} parent=0
    _
  %s10 = ssub.s32 1, %s8
  %s11 = scalar_select 0, %s10, %s8
  $region1: #{tpu_custom_call.1} parent=0
    #allocation2 [shape = 'u8[512]{0}', space=vmem, size = 0x400, scoped, tag = 'input window, operand 2, single buffered']
    #allocation3 [shape = 's32[1]{0}', space=sflag, size = 0x4, scoped, tag = 'scoped memory for tpu_custom_call.1']
    #allocation4 [shape = 's32[1]{0}', space=sflag, size = 0x4, scoped, tag = 'scoped memory for tpu_custom_call.1']
    #allocation5 [shape = 'u8[32768]{0}', space=vmem, size = 0x8000, scoped, tag = 'input window, operand 3, single buffered']
    #allocation6 [shape = 's32[1]{0}', space=sflag, size = 0x4, scoped, tag = 'scoped memory for tpu_custom_call.1']
    #allocation7 [shape = 'u8[512]{0}', space=vmem, size = 0x400, scoped, tag = 'input window, operand 4, single buffered']
    #allocation8 [shape = 'u8[4096]{0}', space=vmem, size = 0x1000, scoped, tag = 'output window, operand 0, single buffered']
    %12 = vsyncpa [#allocation3], 0
    %13 = vsyncpa [#allocation6], 0
    %14 = vsyncpa [#allocation4], 0
    // Predicated region
    $region2: #{tpu_custom_call.1} parent=1 // pred_check
      _
    $region3: #{tpu_custom_call.1} parent=1 // pred_check_branch
      %16 = sbr.rel (0) target = $region5
    $region4: #{tpu_custom_call.1} parent=1 // pred_region
      _
    $region5: #{tpu_custom_call.1} parent=1 // pred_fallthru
      _
    // Predicated region
    $region6: #{tpu_custom_call.1} parent=1 // pred_check
      _
    $region7: #{tpu_custom_call.1} parent=1 // pred_check_branch
      %18 = sbr.rel (0) target = $region9
    $region8: #{tpu_custom_call.1} parent=1 // pred_region
      _
    $region9: #{tpu_custom_call.1} parent=1 // pred_fallthru
      _
    // Predicated region
    $region10: #{tpu_custom_call.1} parent=1 // pred_check
      _
    $region11: #{tpu_custom_call.1} parent=1 // pred_check_branch
      %20 = sbr.rel (0) target = $region13
    $region12: #{tpu_custom_call.1} parent=1 // pred_region
      %22 = vsyncadd [#allocation3], 0
      %s24 = sshll.u32 %s2, 4
      %s25 = int_to_ptr.hbm [resolvable:$true] %s24
      %s26 = sshll.u32 [#allocation2], 4
      %s27 = int_to_ptr.vmem [resolvable:$true] %s26
      %29 = dma.hbm_to_vmem [thread:$0]  %s25, 16, %s27, [#allocation3]
    $region13: #{tpu_custom_call.1} parent=1 // pred_fallthru
      _
    // Predicated region
    $region14: #{tpu_custom_call.1} parent=1 // pred_check
      _
    $region15: #{tpu_custom_call.1} parent=1 // pred_check_branch
      %31 = sbr.rel (0) target = $region17
    $region16: #{tpu_custom_call.1} parent=1 // pred_region
      %33 = vsyncadd [#allocation6], 0
      %s34 = sshll.u32 %s3, 4
      %s35 = int_to_ptr.hbm [resolvable:$true] %s34
      %s36 = sshll.u32 [#allocation5], 4
      %s37 = int_to_ptr.vmem [resolvable:$true] %s36
      %42 = dma.hbm_to_vmem [thread:$0]  %s35, 1024, %s37, [#allocation6], 64, 64, 4
    $region17: #{tpu_custom_call.1} parent=1 // pred_fallthru
      _
    // Predicated region
    $region18: #{tpu_custom_call.1} parent=1 // pred_check
      _
    $region19: #{tpu_custom_call.1} parent=1 // pred_check_branch
      %44 = sbr.rel (0) target = $region21
    $region20: #{tpu_custom_call.1} parent=1 // pred_region
      %46 = vsyncadd [#allocation6], 0
      %s48 = sshll.u32 %s4, 4
      %s49 = int_to_ptr.hbm [resolvable:$true] %s48
      %s50 = sshll.u32 [#allocation7], 4
      %s51 = int_to_ptr.vmem [resolvable:$true] %s50
      %53 = dma.hbm_to_vmem [thread:$0]  %s49, 16, %s51, [#allocation6]
    $region21: #{tpu_custom_call.1} parent=1 // pred_fallthru
      _
    // Predicated region
    $region22: #{tpu_custom_call.1} parent=1 // pred_check
      _
    $region23: #{tpu_custom_call.1} parent=1 // pred_check_branch
      %55 = sbr.rel (0) target = $region25
    $region24: #{tpu_custom_call.1} parent=1 // pred_region
      _
    $region25: #{tpu_custom_call.1} parent=1 // pred_fallthru
      _
    // Predicated region
    $region26: #{tpu_custom_call.1} parent=1 // pred_check
      _
    $region27: #{tpu_custom_call.1} parent=1 // pred_check_branch
      %57 = sbr.rel (0) target = $region29
    $region28: #{tpu_custom_call.1} parent=1 // pred_region
      _
    $region29: #{tpu_custom_call.1} parent=1 // pred_fallthru
      _
    // Predicated region
    $region30: #{tpu_custom_call.1} parent=1 // pred_check
      _
    $region31: #{tpu_custom_call.1} parent=1 // pred_check_branch
      %59 = sbr.rel (0) target = $region33
    $region32: #{tpu_custom_call.1} parent=1 // pred_region
      %61 = dma.done [#allocation3], 16
    $region33: #{tpu_custom_call.1} parent=1 // pred_fallthru
      _
    // Predicated region
    $region34: #{tpu_custom_call.1} parent=1 // pred_check
      _
    $region35: #{tpu_custom_call.1} parent=1 // pred_check_branch
      %63 = sbr.rel (0) target = $region37
    $region36: #{tpu_custom_call.1} parent=1 // pred_region
      %65 = dma.done [#allocation6], 1024
    $region37: #{tpu_custom_call.1} parent=1 // pred_fallthru
      _
    // Predicated region
    $region38: #{tpu_custom_call.1} parent=1 // pred_check
      _
    $region39: #{tpu_custom_call.1} parent=1 // pred_check_branch
      %67 = sbr.rel (0) target = $region41
    $region40: #{tpu_custom_call.1} parent=1 // pred_region
      %69 = dma.done [#allocation6], 16
    $region41: #{tpu_custom_call.1} parent=1 // pred_fallthru
      _
    %v71 = vld [vmem:[%s0] sm:$0xf]
    %v72 = vld [vmem:[%s1] sm:$0xf]
    %v73 = vld [vmem:[#allocation2] sm:$0x1]
    %v75 = vperm.slane %v73, 0
    %vm77 = vcmask 64512
    %v79 = vsel %vm77, %v71, 0
    %vm81 = vcmask 1043456
    %v83 = vsel %vm81, %v72, 0
    %85 = vmatpush.bf16.msra.mxu0 0
    %86 = vmatpush.bf16.msra.mxu0 0
    %87 = vmatpush.bf16.msra.mxu0 0
    %88 = vmatpush.bf16.msra.mxu0 0
    %89 = vmatpush.bf16.msra.mxu0 0
    %90 = vmatpush.bf16.msra.mxu0 0
    %91 = vmatpush.bf16.msra.mxu0 0
    %92 = vmatpush.bf16.msra.mxu0 %v83
    %93 = vmatmul.bf16.gmra.mxu0 %v79
    %v94 = vpop.f32.mrf.mxu0
    %v95 = vadd.f32 %v75, %v94
    %v96 = vpop.f32.mrf.mxu0
    %97 = vdwg.mxu0
    %v98 = vmax.f32 %v95, 0.0
    %v99 = vpack.c.bf16 %v98, %v98
    %v100 = vld [vmem:[#allocation5] sm:$0xf]
    %v101 = vld [vmem:[#allocation5 + $0x4] sm:$0xf]
    %v102 = vld [vmem:[#allocation5 + $0x8] sm:$0xf]
    %v103 = vld [vmem:[#allocation5 + $0xc] sm:$0xf]
    %v104 = vld [vmem:[#allocation5 + $0x10] sm:$0xf]
    %v105 = vld [vmem:[#allocation5 + $0x14] sm:$0xf]
    %v106 = vld [vmem:[#allocation5 + $0x18] sm:$0xf]
    %v107 = vld [vmem:[#allocation5 + $0x1c] sm:$0xf]
    %v108 = vld [vmem:[#allocation5 + $0x20] sm:$0xf]
    %v109 = vld [vmem:[#allocation5 + $0x24] sm:$0xf]
    %v110 = vld [vmem:[#allocation5 + $0x28] sm:$0xf]
    %v111 = vld [vmem:[#allocation5 + $0x2c] sm:$0xf]
    %v112 = vld [vmem:[#allocation5 + $0x30] sm:$0xf]
    %v113 = vld [vmem:[#allocation5 + $0x34] sm:$0xf]
    %v114 = vld [vmem:[#allocation5 + $0x38] sm:$0xf]
    %v115 = vld [vmem:[#allocation5 + $0x3c] sm:$0xf]
    %v116 = vld [vmem:[#allocation7] sm:$0x1]
    %v118 = vperm.slane %v116, 0
    %v136 = vunpack.c.l.b16 %v100
    %v137 = vunpack.c.l.b16 %v101
    %v138 = vunpack.c.l.b16 %v102
    %v139 = vunpack.c.l.b16 %v103
    %v140 = vunpack.c.l.b16 %v104
    %v141 = vunpack.c.l.b16 %v105
    %v142 = vunpack.c.l.b16 %v106
    %v143 = vunpack.c.l.b16 %v107
    %v144 = vunpack.c.l.b16 %v108
    %v145 = vunpack.c.l.b16 %v109
    %v146 = vunpack.c.l.b16 %v110
    %v147 = vunpack.c.l.b16 %v111
    %v148 = vunpack.c.l.b16 %v112
    %v149 = vunpack.c.l.b16 %v113
    %v150 = vunpack.c.l.b16 %v114
    %v151 = vunpack.c.l.b16 %v115
    %v152 = vpack.c.b16 %v137, %v136
    %v153 = vpack.c.b16 %v139, %v138
    %v154 = vpack.c.b16 %v141, %v140
    %v155 = vpack.c.b16 %v143, %v142
    %v156 = vpack.c.b16 %v145, %v144
    %v157 = vpack.c.b16 %v147, %v146
    %v158 = vpack.c.b16 %v149, %v148
    %v159 = vpack.c.b16 %v151, %v150
    %168 = vmatpush.bf16.msra.mxu0 %v159
    %169 = vmatpush.bf16.msra.mxu0 %v158
    %170 = vmatpush.bf16.msra.mxu0 %v157
    %171 = vmatpush.bf16.msra.mxu0 %v156
    %172 = vmatpush.bf16.msra.mxu0 %v155
    %173 = vmatpush.bf16.msra.mxu0 %v154
    %174 = vmatpush.bf16.msra.mxu0 %v153
    %175 = vmatpush.bf16.msra.mxu0 %v152
    %176 = vmatmul.bf16.gmra.mxu0 %v99
    %v177 = vpop.f32.mrf.mxu0
    %v178 = vadd.f32 %v118, %v177
    %v179 = vpop.f32.mrf.mxu0
    %180 = vdwg.mxu0
    %v181 = vmax.f32 %v178, 0.0
    %v182 = vld [vmem:[%s5] sm:$0xf]
    %v183 = vpack.c.bf16 %v181, %v181
    %v184 = vld [vmem:[%s6] sm:$0xff]
    %186 = vset.pattern.permute.xlu0 0
    %187 = vperm.xlu0 %186, %v184
    %v188 = vpop.permute.xlu0 %187
    %190 = vmatpush.bf16.xpose.msra.mxu0 0
    %191 = vmatpush.bf16.xpose.msra.mxu0 0
    %192 = vmatpush.bf16.xpose.msra.mxu0 0
    %193 = vmatpush.bf16.xpose.msra.mxu0 0
    %194 = vmatpush.bf16.xpose.msra.mxu0 0
    %195 = vmatpush.bf16.xpose.msra.mxu0 0
    %196 = vmatpush.bf16.xpose.msra.mxu0 0
    %197 = vmatpush.bf16.xpose.msra.mxu0 %v183
    %198 = vmatmul.bf16.gmra.mxu0 %v182
    %v199 = vpop.f32.mrf.mxu0
    %v200 = vadd.f32 %v188, %v199
    %v201 = vpop.f32.mrf.mxu0
    %202 = vdwg.mxu0
    %203 = vst.msk [vmem:[#allocation8] sm:$0xff] %vm77, %v200
    // Predicated region
    $region42: #{tpu_custom_call.1} parent=1 // pred_check
      _
    $region43: #{tpu_custom_call.1} parent=1 // pred_check_branch
      %205 = sbr.rel (0) target = $region45
    $region44: #{tpu_custom_call.1} parent=1 // pred_region
      %207 = vsyncadd [#allocation4], 0
      %s209 = sshll.u32 [#allocation8], 4
      %s210 = int_to_ptr.vmem [resolvable:$true] %s209
      %s211 = sshll.u32 %s7, 4
      %s212 = int_to_ptr.hbm [resolvable:$true] %s211
      %214 = dma.vmem_to_hbm [thread:$0]  %s210, 128, %s212, [#allocation4]
    $region45: #{tpu_custom_call.1} parent=1 // pred_fallthru
      _
    // Predicated region
    $region46: #{tpu_custom_call.1} parent=1 // pred_check
      _
    $region47: #{tpu_custom_call.1} parent=1 // pred_check_branch
      %216 = sbr.rel (0) target = $region49
    $region48: #{tpu_custom_call.1} parent=1 // pred_region
      %218 = dma.done [#allocation4], 128
    $region49: #{tpu_custom_call.1} parent=1 // pred_fallthru
      _
    %219 = vsyncpa [#allocation3], 1
    %220 = vsyncpa [#allocation6], 1
    %221 = vsyncpa [#allocation4], 1

</llo_original>
